<compile_context>
chip_gen: v5e
topology: v5e:2x2
jax: 0.10.0
libtpu: 0.0.40
codegen_flags: <defaults>
</compile_context>

<pallas_src>
import jax
import jax.numpy as jnp
from jax import lax
from jax.experimental import pallas as pl
from jax.experimental.pallas import tpu as pltpu


# ----------------------------------------------------------------------------
# Pallas kernels
# ----------------------------------------------------------------------------

def _fs_prelu_add_kernel(alpha_ref, w_ref, x1_ref, x2_ref, o_ref):
    """y = x2 + PReLU(W_fs @ x1) for one (batch, spatial-tile) block.

    alpha_ref : (1,)        f32 in SMEM
    w_ref     : (C, C)      bf16
    x1_ref    : (1, C, T)   bf16
    x2_ref    : (1, C, T)   bf16
    o_ref     : (1, C, T)   bf16
    """
    a = alpha_ref[0]
    r = jnp.dot(w_ref[...], x1_ref[0], preferred_element_type=jnp.float32)
    r = jnp.where(r >= 0.0, r, a * r)                        # PReLU (f32)
    o_ref[0] = (r + x2_ref[0].astype(jnp.float32)).astype(o_ref.dtype)


def _ffu_prelu_kernel(alpha_ref, w_ref, p_ref, o_ref):
    """Sub-pixel decomposed ConvTranspose2d(k=3, s=2, p=1, op=1) + PReLU.

    The 4 taps of the 2x2 input window are stacked along the contraction axis
    so the whole transpose conv is ONE MXU dot per spatial tile.

    alpha_ref : (1,)                f32 in SMEM
    w_ref     : (4*Cout, 4*Cin)     bf16
    p_ref     : (1, 4*Cin, T)       bf16 (taps stacked on channels)
    o_ref     : (1, 4*Cout, T)      f32  (4 output phases stacked on channels)
    """
    a = alpha_ref[0]
    acc = jnp.dot(w_ref[...], p_ref[0], preferred_element_type=jnp.float32)
    o_ref[0] = jnp.where(acc >= 0.0, acc, a * acc)           # PReLU (f32)


# ----------------------------------------------------------------------------
# Helpers
# ----------------------------------------------------------------------------

def _spatial_tiling(n):
    """Pad spatial length to a multiple of 128 and pick the largest tile that
    divides the padded length (keeps lane-dense stores + pipelining alive)."""
    npad = -(-n // 128) * 128
    tile = 128
    for t in (2048, 1024, 512, 256):
        if npad % t == 0:
            tile = t
            break
    return tile, npad


def _pad_last(x, npad):
    pad = npad - x.shape[-1]
    if pad:
        x = jnp.pad(x, [(0, 0)] * (x.ndim - 1) + [(0, pad)])
    return x


def _parallel2():
    return pltpu.CompilerParams(dimension_semantics=("parallel", "parallel"))


def _build_ffu_weight(w):
    """w: (Cin, Cout, 3, 3) PyTorch ConvTranspose2d weight.

    Returns (4*Cout, 4*Cin): for tap (dy, dx) in the 2x2 input window and
    output phase (a, b):
        W[(a*2+b)*Cout + co, (dy*2+dx)*Cin + ci] = w[ci, co, a+1-2*dy, b+1-2*dx]
    (zero where the kernel index is out of range).  Then
        out[co, 2m+a, 2n+b] = sum_{ci,dy,dx} W[...] * y_pad[ci, m+dy, n+dx].
    """
    cin, cout = w.shape[0], w.shape[1]
    taps = []
    for dy in (0, 1):
        for dx in (0, 1):
            blocks = []
            for a in (0, 1):
                for b in (0, 1):
                    ky = a + 1 - 2 * dy
                    kx = b + 1 - 2 * dx
                    if 0 <= ky <= 2 and 0 <= kx <= 2:
                        blk = w[:, :, ky, kx].T              # (Cout, Cin)
                    else:
                        blk = jnp.zeros((cout, cin), w.dtype)
                    blocks.append(blk)
            taps.append(jnp.concatenate(blocks, axis=0))     # (4*Cout, Cin)
    w4 = jnp.stack(taps, axis=0)                             # (4, 4*Cout, Cin)
    # pack taps along the contraction axis -> (4*Cout, 4*Cin)
    return w4.transpose(1, 0, 2).reshape(4 * cout, 4 * cin)


# ----------------------------------------------------------------------------
# Pallas wrappers
# ----------------------------------------------------------------------------

def fs_prelu_add(alpha, w_fs, x1, x2):
    """y = x2 + PReLU(Conv1x1_nobias(x1)); returned in bf16 NCHW."""
    B, C, H, W = x1.shape
    HW = H * W
    tile, npad = _spatial_tiling(HW)
    x1f = _pad_last(x1.reshape(B, C, HW).astype(jnp.bfloat16), npad)
    x2f = _pad_last(x2.reshape(B, C, HW).astype(jnp.bfloat16), npad)
    wb = w_fs.reshape(C, C).astype(jnp.bfloat16)              # (Cout, Cin)

    out = pl.pallas_call(
        _fs_prelu_add_kernel,
        out_shape=jax.ShapeDtypeStruct((B, C, npad), jnp.bfloat16),
        grid=(B, npad // tile),
        in_specs=[
            pl.BlockSpec(memory_space=pltpu.MemorySpace.SMEM),
            pl.BlockSpec((C, C), lambda b, t: (0, 0)),
            pl.BlockSpec((1, C, tile), lambda b, t: (b, 0, t)),
            pl.BlockSpec((1, C, tile), lambda b, t: (b, 0, t)),
        ],
        out_specs=pl.BlockSpec((1, C, tile), lambda b, t: (b, 0, t)),
        compiler_params=_parallel2(),
    )(alpha.reshape(1).astype(jnp.float32), wb, x1f, x2f)
    return out[:, :, :HW].reshape(B, C, H, W)


def ffu_prelu(alpha, w_ffu, y):
    """PReLU(ConvTranspose2d(k=3, s=2, p=1, op=1, bias=False)(y)) via the
    4-phase sub-pixel decomposition.  y: (B, C, H, W) bf16 -> (B, Cout, 2H, 2W) f32."""
    B, C, H, W = y.shape
    Cout = w_ffu.shape[1]
    HW = H * W
    tile, npad = _spatial_tiling(HW)

    # 2x2 tap neighbourhood (pad one row/col of zeros at bottom/right), then
    # stack the 4 shifted views along the channel (contraction) axis.
    y_pad = jnp.pad(y, ((0, 0), (0, 0), (0, 1), (0, 1)))
    taps = []
    for dy in (0, 1):
        for dx in (0, 1):
            sl = lax.slice(y_pad, (0, 0, dy, dx), (B, C, dy + H, dx + W))
            taps.append(sl.reshape(B, C, HW))
    p = _pad_last(jnp.concatenate(taps, axis=1), npad)        # (B, 4*C, npad)

    w_full = _build_ffu_weight(w_ffu).astype(jnp.bfloat16)    # (4*Cout, 4*C)

    out4 = pl.pallas_call(
        _ffu_prelu_kernel,
        out_shape=jax.ShapeDtypeStruct((B, 4 * Cout, npad), jnp.float32),
        grid=(B, npad // tile),
        in_specs=[
            pl.BlockSpec(memory_space=pltpu.MemorySpace.SMEM),
            pl.BlockSpec((4 * Cout, 4 * C), lambda b, t: (0, 0)),
            pl.BlockSpec((1, 4 * C, tile), lambda b, t: (b, 0, t)),
        ],
        out_specs=pl.BlockSpec((1, 4 * Cout, tile), lambda b, t: (b, 0, t)),
        compiler_params=_parallel2(),
    )(alpha.reshape(1).astype(jnp.float32), w_full, p)

    out4 = out4[:, :, :HW]
    # pixel shuffle: channel index = (a*2 + b)*Cout + co -> out[co, 2m+a, 2n+b]
    out = out4.reshape(B, 2, 2, Cout, H, W)
    out = out.transpose(0, 3, 4, 1, 5, 2).reshape(B, Cout, 2 * H, 2 * W)
    return out


def lfsfb_forward(params, x1, x2):
    alpha = params['alpha']
    y = fs_prelu_add(alpha, params['fs_w'], x1, x2)           # x2 + act1(FS(x1))
    return ffu_prelu(alpha, params['ffu_w'], y)               # act2(FFU(...))


# ----------------------------------------------------------------------------
# Pure-JAX reference (mirrors the bf16 casts of the Pallas path)
# ----------------------------------------------------------------------------

def lfsfb_reference(params, x1, x2):
    alpha = params['alpha']
    f = lambda v: v.astype(jnp.bfloat16).astype(jnp.float32)
    prelu = lambda v: jnp.where(v >= 0, v, alpha * v)

    w_fs = f(params['fs_w'])                                  # (Cout, Cin, 1, 1)
    w_ffu = f(params['ffu_w'])                                # (Cin, Cout, 3, 3)

    res = lax.conv_general_dilated(
        f(x1), w_fs, (1, 1), 'VALID',
        dimension_numbers=('NCHW', 'OIHW', 'NCHW'),
        precision=lax.Precision.HIGHEST)
    y = f(x2) + prelu(res)
    y = f(y)                                                  # mirror bf16 storage

    # ConvTranspose2d(k=3, s=2, p=1, op=1) == lhs-dilated conv w/ flipped kernel
    w_eq = jnp.flip(w_ffu, (2, 3)).transpose(1, 0, 2, 3)      # (Cout, Cin, 3, 3)
    out = lax.conv_general_dilated(
        y, w_eq, (1, 1), ((1, 2), (1, 2)), lhs_dilation=(2, 2),
        dimension_numbers=('NCHW', 'OIHW', 'NCHW'),
        precision=lax.Precision.HIGHEST)
    return prelu(out)


# ----------------------------------------------------------------------------
# Main
# ----------------------------------------------------------------------------

if __name__ == "__main__":
    n_feat, B, H, W = 16, 2, 16, 16

    root = jax.random.PRNGKey(0)
    k1, k2, k3, k4 = jax.random.split(root, 4)
    x1 = jax.random.normal(k1, (B, n_feat, H, W), jnp.float32)
    x2 = jax.random.normal(k2, (B, n_feat, H, W), jnp.float32)
    params = {
        'alpha': jnp.array(0.25, jnp.float32),                # nn.PReLU() init
        'fs_w': jax.random.normal(k3, (n_feat, n_feat, 1, 1), jnp.float32)
                / jnp.sqrt(float(n_feat)),
        'ffu_w': jax.random.normal(k4, (n_feat, n_feat, 3, 3), jnp.float32)
                 / jnp.sqrt(float(n_feat * 9)),
    }

    fwd = jax.jit(lfsfb_forward)
    out = fwd(params, x1, x2)
    jax.block_until_ready(out)

    ref = lfsfb_reference(params, x1, x2)

    assert out.shape == (B, n_feat, 2 * H, 2 * W), out.shape
    assert bool(jnp.all(jnp.isfinite(out)))
    assert bool(jnp.allclose(out, ref, atol=2e-3, rtol=2e-3)), \
        float(jnp.max(jnp.abs(out - ref)))
    print("KERNEL_OK")
</pallas_src>

<mosaic_0001>
module attributes {stable_mosaic.version = 11 : i64} {
  func.func @_fs_prelu_add_kernel(%arg0: i32, %arg1: i32, %arg2: memref<1xf32, #tpu.memory_space<smem>>, %arg3: memref<16x16xbf16, #tpu.memory_space<vmem>>, %arg4: memref<1x16x256xbf16, #tpu.memory_space<vmem>>, %arg5: memref<1x16x256xbf16, #tpu.memory_space<vmem>>, %arg6: memref<1x16x256xbf16, #tpu.memory_space<vmem>>) attributes {dimension_semantics = [#tpu.dimension_semantics<parallel>, #tpu.dimension_semantics<parallel>], iteration_bounds = array<i64: 2, 1>, scalar_prefetch = 0 : i64, scratch_operands = 0 : i64, tpu.core_type = #tpu.core_type<tc>, window_params = [{transform_indices = @transform_0, window_bounds = array<i64: 1>}, {pipeline_mode = #tpu.pipeline_mode<synchronous>, transform_indices = @transform_1, window_bounds = array<i64: 16, 16>}, {transform_indices = @transform_2, window_bounds = array<i64: 1, 16, 256>}, {transform_indices = @transform_3, window_bounds = array<i64: 1, 16, 256>}, {transform_indices = @transform_4, window_bounds = array<i64: 1, 16, 256>}]} {
    %c0 = arith.constant 0 : index
    %0 = memref.load %arg2[%c0] : memref<1xf32, #tpu.memory_space<smem>>
    %c0_0 = arith.constant 0 : index
    %c0_1 = arith.constant 0 : index
    %1 = vector.load %arg3[%c0_0, %c0_1] : memref<16x16xbf16, #tpu.memory_space<vmem>>, vector<16x16xbf16>
    %c0_2 = arith.constant 0 : index
    %c0_3 = arith.constant 0 : index
    %c0_4 = arith.constant 0 : index
    %2 = vector.load %arg4[%c0_2, %c0_3, %c0_4] : memref<1x16x256xbf16, #tpu.memory_space<vmem>>, vector<1x16x256xbf16>
    %3 = vector.shape_cast %2 : vector<1x16x256xbf16> to vector<16x256xbf16>
    %cst = arith.constant dense<0.000000e+00> : vector<16x256xf32>
    %4 = tpu.matmul %1, %3, %cst {dimension_numbers = #tpu.dot_dimension_numbers<[1], [0], [0], [1], [0, 0, 1, 1], [], []>} : vector<16x16xbf16>, vector<16x256xbf16>, vector<16x256xf32> -> vector<16x256xf32>
    %cst_5 = arith.constant 0.000000e+00 : f32
    %5 = vector.broadcast %cst_5 : f32 to vector<16x256xf32>
    %6 = arith.cmpf oge, %4, %5 : vector<16x256xf32>
    %7 = vector.broadcast %0 : f32 to vector<16x256xf32>
    %8 = arith.mulf %7, %4 : vector<16x256xf32>
    %9 = arith.select %6, %4, %8 : vector<16x256xi1>, vector<16x256xf32>
    %c0_6 = arith.constant 0 : index
    %c0_7 = arith.constant 0 : index
    %c0_8 = arith.constant 0 : index
    %10 = vector.load %arg5[%c0_6, %c0_7, %c0_8] : memref<1x16x256xbf16, #tpu.memory_space<vmem>>, vector<1x16x256xbf16>
    %11 = vector.shape_cast %10 : vector<1x16x256xbf16> to vector<16x256xbf16>
    %12 = arith.extf %11 : vector<16x256xbf16> to vector<16x256xf32>
    %13 = arith.addf %9, %12 : vector<16x256xf32>
    %14 = arith.truncf %13 : vector<16x256xf32> to vector<16x256xbf16>
    %c0_9 = arith.constant 0 : index
    %c0_10 = arith.constant 0 : index
    %c0_11 = arith.constant 0 : index
    %15 = vector.load %arg6[%c0_9, %c0_10, %c0_11] : memref<1x16x256xbf16, #tpu.memory_space<vmem>>, vector<1x16x256xbf16>
    %16 = vector.shape_cast %15 : vector<1x16x256xbf16> to vector<16x256xbf16>
    %17 = vector.shape_cast %14 : vector<16x256xbf16> to vector<1x16x256xbf16>
    tpu.vector_store %arg6[%c0_9, %c0_10, %c0_11], %17 {strides = array<i32>} : memref<1x16x256xbf16, #tpu.memory_space<vmem>>, vector<1x16x256xbf16>,
    return
  }
  func.func @transform_0(%arg0: i32, %arg1: i32) -> i32 {
    %c0_i32 = arith.constant 0 : i32
    %c0_i32_0 = arith.constant 0 : i32
    return %c0_i32 : i32
  }
  func.func @transform_1(%arg0: i32, %arg1: i32) -> (i32, i32) {
    %c0_i32 = arith.constant 0 : i32
    %c0_i32_0 = arith.constant 0 : i32
    %c0_i32_1 = arith.constant 0 : i32
    return %c0_i32, %c0_i32_0 : i32, i32
  }
  func.func @transform_2(%arg0: i32, %arg1: i32) -> (i32, i32, i32) {
    %c0_i32 = arith.constant 0 : i32
    %c0_i32_0 = arith.constant 0 : i32
    return %arg0, %c0_i32, %arg1 : i32, i32, i32
  }
  func.func @transform_3(%arg0: i32, %arg1: i32) -> (i32, i32, i32) {
    %c0_i32 = arith.constant 0 : i32
    %c0_i32_0 = arith.constant 0 : i32
    return %arg0, %c0_i32, %arg1 : i32, i32, i32
  }
  func.func @transform_4(%arg0: i32, %arg1: i32) -> (i32, i32, i32) {
    %c0_i32 = arith.constant 0 : i32
    %c0_i32_0 = arith.constant 0 : i32
    return %arg0, %c0_i32, %arg1 : i32, i32, i32
  }
}

module attributes {stable_mosaic.version = 11 : i64} {
  func.func @_ffu_prelu_kernel(%arg0: i32, %arg1: i32, %arg2: memref<1xf32, #tpu.memory_space<smem>>, %arg3: memref<64x64xbf16, #tpu.memory_space<vmem>>, %arg4: memref<1x64x256xbf16, #tpu.memory_space<vmem>>, %arg5: memref<1x64x256xf32, #tpu.memory_space<vmem>>) attributes {dimension_semantics = [#tpu.dimension_semantics<parallel>, #tpu.dimension_semantics<parallel>], iteration_bounds = array<i64: 2, 1>, scalar_prefetch = 0 : i64, scratch_operands = 0 : i64, tpu.core_type = #tpu.core_type<tc>, window_params = [{transform_indices = @transform_0, window_bounds = array<i64: 1>}, {pipeline_mode = #tpu.pipeline_mode<synchronous>, transform_indices = @transform_1, window_bounds = array<i64: 64, 64>}, {transform_indices = @transform_2, window_bounds = array<i64: 1, 64, 256>}, {transform_indices = @transform_3, window_bounds = array<i64: 1, 64, 256>}]} {
    %c0 = arith.constant 0 : index
    %0 = memref.load %arg2[%c0] : memref<1xf32, #tpu.memory_space<smem>>
    %c0_0 = arith.constant 0 : index
    %c0_1 = arith.constant 0 : index
    %1 = vector.load %arg3[%c0_0, %c0_1] : memref<64x64xbf16, #tpu.memory_space<vmem>>, vector<64x64xbf16>
    %c0_2 = arith.constant 0 : index
    %c0_3 = arith.constant 0 : index
    %c0_4 = arith.constant 0 : index
    %2 = vector.load %arg4[%c0_2, %c0_3, %c0_4] : memref<1x64x256xbf16, #tpu.memory_space<vmem>>, vector<1x64x256xbf16>
    %3 = vector.shape_cast %2 : vector<1x64x256xbf16> to vector<64x256xbf16>
    %cst = arith.constant dense<0.000000e+00> : vector<64x256xf32>
    %4 = tpu.matmul %1, %3, %cst {dimension_numbers = #tpu.dot_dimension_numbers<[1], [0], [0], [1], [0, 0, 1, 1], [], []>} : vector<64x64xbf16>, vector<64x256xbf16>, vector<64x256xf32> -> vector<64x256xf32>
    %cst_5 = arith.constant 0.000000e+00 : f32
    %5 = vector.broadcast %cst_5 : f32 to vector<64x256xf32>
    %6 = arith.cmpf oge, %4, %5 : vector<64x256xf32>
    %7 = vector.broadcast %0 : f32 to vector<64x256xf32>
    %8 = arith.mulf %7, %4 : vector<64x256xf32>
    %9 = arith.select %6, %4, %8 : vector<64x256xi1>, vector<64x256xf32>
    %c0_6 = arith.constant 0 : index
    %c0_7 = arith.constant 0 : index
    %c0_8 = arith.constant 0 : index
    %10 = vector.load %arg5[%c0_6, %c0_7, %c0_8] : memref<1x64x256xf32, #tpu.memory_space<vmem>>, vector<1x64x256xf32>
    %11 = vector.shape_cast %10 : vector<1x64x256xf32> to vector<64x256xf32>
    %12 = vector.shape_cast %9 : vector<64x256xf32> to vector<1x64x256xf32>
    tpu.vector_store %arg5[%c0_6, %c0_7, %c0_8], %12 {strides = array<i32>} : memref<1x64x256xf32, #tpu.memory_space<vmem>>, vector<1x64x256xf32>,
    return
  }
  func.func @transform_0(%arg0: i32, %arg1: i32) -> i32 {
    %c0_i32 = arith.constant 0 : i32
    %c0_i32_0 = arith.constant 0 : i32
    return %c0_i32 : i32
  }
  func.func @transform_1(%arg0: i32, %arg1: i32) -> (i32, i32) {
    %c0_i32 = arith.constant 0 : i32
    %c0_i32_0 = arith.constant 0 : i32
    %c0_i32_1 = arith.constant 0 : i32
    return %c0_i32, %c0_i32_0 : i32, i32
  }
  func.func @transform_2(%arg0: i32, %arg1: i32) -> (i32, i32, i32) {
    %c0_i32 = arith.constant 0 : i32
    %c0_i32_0 = arith.constant 0 : i32
    return %arg0, %c0_i32, %arg1 : i32, i32, i32
  }
  func.func @transform_3(%arg0: i32, %arg1: i32) -> (i32, i32, i32) {
    %c0_i32 = arith.constant 0 : i32
    %c0_i32_0 = arith.constant 0 : i32
    return %arg0, %c0_i32, %arg1 : i32, i32, i32
  }
}

</mosaic_0001>

<llo_original>
// kernel: lfsfb_forward.2
$region0: #{lfsfb_forward.2}
  #allocation0 [shape = 'u32[]', space=smem, size = 0x4, offset = 0x4, fixed_abs, tag = 'smem constant byte address 0x4 - core index']
  #allocation1 [shape = 'u32[72,128]{1,0:T(1,128)}', space=vmem, size = 0x9000, scoped, tag = 'internal scratch']
  #allocation2 [shape = 'f32[1]{0:T(128)S(6)}', space=smem, size = 0x200, scoped, tag = 'scoped memory for lfsfb_forward.2']
  %s0 = inlined_call_operand.<no memory space> [shape: f32[1], index: 0, kind: input, shape index: {}]
  %s1 = inlined_call_operand.vmem [shape: bf16[16,16], index: 1, kind: input, shape index: {}]
  %s2 = inlined_call_operand.vmem [shape: bf16[2,16,256], index: 2, kind: input, shape index: {}]
  %s3 = inlined_call_operand.vmem [shape: bf16[2,16,256], index: 3, kind: input, shape index: {}]
  %s4 = inlined_call_operand.vmem [shape: bf16[2,16,256], index: 4, kind: output, shape index: {}]
  %s5 = sld [smem:[#allocation0]]
  $region49: #{lfsfb_forward.2} parent=0
    _
  %s7 = ssub.s32 1, %s5
  %s8 = scalar_select 0, %s7, %s5
  %9 = sst [smem:[#allocation2]] %s0
  loop: start=0, step=1, limit=4
  $region2: #{lfsfb_forward.2} parent=0 // loop_pre_header
    _
  $region3: #{lfsfb_forward.2} parent=0 // loop_header
    %s11 = sphi 0, %s15
    %p12 = scmp.ge.s32.totalorder %s11, 4
    %s18 = sphi 0, %s30
    %s19 = sphi 0, %s26
    %s20 = sphi 0, %s18
    %s21 = sphi 0, %s19
    %s22 = sphi 0, %s20
    %s23 = sphi 0, %s21
    %s31 = sphi 0, %s31
    %s33 = sphi 0, %s31
    %s34 = sphi 0, %s33
    %s48 = sphi 0, %s34
    %s52 = sphi 0, %s52
    %s54 = sphi 0, %s52
    %s55 = sphi 0, %s54
    %s69 = sphi 0, %s55
    %s77 = sphi 0, %s79
    %s80 = sphi 0, %s77
    %s81 = sphi 0, %s80
    %s97 = sphi 0, %s81
    %s105 = sphi 0, %s107
    %s108 = sphi 0, %s105
    %s109 = sphi 0, %s108
    %s125 = sphi 0, %s109
    %s133 = sphi 0, %s135
    %s136 = sphi 0, %s133
    %s137 = sphi 0, %s136
    %s153 = sphi 0, %s137
  $region4: #{lfsfb_forward.2} parent=0 // loop_header_branch
    %14 = sbr.rel (%p12) target = $region8
  $region5: #{lfsfb_forward.2} parent=0 // loop_body
    %s16 = ssub.s32 %s11, 1
    %s17 = ssub.s32 %s11, 2
    %s24 = sadd.s32 1, %s19
    %p25 = scmp.ge.s32.totalorder %s24, 1
    %s26 = scalar_select %p25, 0, %s24
    %s27 = sadd.s32 1, %s18
    %s28 = scalar_select %p25, %s27, %s18
    %p29 = scmp.ge.s32.totalorder %s28, 2
    %s30 = scalar_select %p29, 0, %s28
    %s32 = sadd.s32 %s31, 1
    %p35 = scmp.eq.s32.totalorder %s11, 1
    %p36 = scmp.ne.s32.totalorder %s31, %s33
    %p37 = scmp.eq.s32.totalorder %s11, 0
    %p38 = por %p36, %p37
    %p39 = scmp.ne.s32.totalorder %s31, %s33
    %p40 = scmp.eq.s32.totalorder %s16, 1
    %p41 = por %p39, %p40
    %p42 = scmp.ne.s32.totalorder %s33, %s34
    %p43 = scmp.eq.s32.totalorder %s16, 0
    %p44 = por %p42, %p43
    %p45 = scmp.ne.s32.totalorder %s33, %s34
    %p46 = scmp.eq.s32.totalorder %s17, 1
    %p47 = por %p45, %p46
    %p49 = scmp.ne.s32.totalorder %s34, %s48
    %p50 = scmp.eq.s32.totalorder %s17, 0
    %p51 = por %p49, %p50
    %s53 = sadd.s32 %s52, 1
    %p56 = scmp.eq.s32.totalorder %s11, 1
    %p57 = scmp.ne.s32.totalorder %s52, %s54
    %p58 = scmp.eq.s32.totalorder %s11, 0
    %p59 = por %p57, %p58
    %p60 = scmp.ne.s32.totalorder %s52, %s54
    %p61 = scmp.eq.s32.totalorder %s16, 1
    %p62 = por %p60, %p61
    %p63 = scmp.ne.s32.totalorder %s54, %s55
    %p64 = scmp.eq.s32.totalorder %s16, 0
    %p65 = por %p63, %p64
    %p66 = scmp.ne.s32.totalorder %s54, %s55
    %p67 = scmp.eq.s32.totalorder %s17, 1
    %p68 = por %p66, %p67
    %p70 = scmp.ne.s32.totalorder %s55, %s69
    %p71 = scmp.eq.s32.totalorder %s17, 0
    %p72 = por %p70, %p71
    %s73 = ssub.s32 %s18, %s30
    %s74 = ssub.s32 %s19, %s26
    %s75 = sor.u32 %s73, %s74
    %p76 = scmp.eq.s32.totalorder %s75, 0
    %s78 = sadd.s32 %s77, 1
    %s79 = scalar_select %p76, %s77, %s78
    %p82 = pneg %p76
    %p83 = scmp.eq.s32.totalorder %s11, 1
    %p84 = por %p82, %p83
    %p85 = scmp.ne.s32.totalorder %s77, %s80
    %p86 = scmp.eq.s32.totalorder %s11, 0
    %p87 = por %p85, %p86
    %p88 = scmp.ne.s32.totalorder %s77, %s80
    %p89 = scmp.eq.s32.totalorder %s16, 1
    %p90 = por %p88, %p89
    %p91 = scmp.ne.s32.totalorder %s80, %s81
    %p92 = scmp.eq.s32.totalorder %s16, 0
    %p93 = por %p91, %p92
    %p94 = scmp.ne.s32.totalorder %s80, %s81
    %p95 = scmp.eq.s32.totalorder %s17, 1
    %p96 = por %p94, %p95
    %p98 = scmp.ne.s32.totalorder %s81, %s97
    %p99 = scmp.eq.s32.totalorder %s17, 0
    %p100 = por %p98, %p99
    %s101 = ssub.s32 %s18, %s30
    %s102 = ssub.s32 %s19, %s26
    %s103 = sor.u32 %s101, %s102
    %p104 = scmp.eq.s32.totalorder %s103, 0
    %s106 = sadd.s32 %s105, 1
    %s107 = scalar_select %p104, %s105, %s106
    %p110 = pneg %p104
    %p111 = scmp.eq.s32.totalorder %s11, 1
    %p112 = por %p110, %p111
    %p113 = scmp.ne.s32.totalorder %s105, %s108
    %p114 = scmp.eq.s32.totalorder %s11, 0
    %p115 = por %p113, %p114
    %p116 = scmp.ne.s32.totalorder %s105, %s108
    %p117 = scmp.eq.s32.totalorder %s16, 1
    %p118 = por %p116, %p117
    %p119 = scmp.ne.s32.totalorder %s108, %s109
    %p120 = scmp.eq.s32.totalorder %s16, 0
    %p121 = por %p119, %p120
    %p122 = scmp.ne.s32.totalorder %s108, %s109
    %p123 = scmp.eq.s32.totalorder %s17, 1
    %p124 = por %p122, %p123
    %p126 = scmp.ne.s32.totalorder %s109, %s125
    %p127 = scmp.eq.s32.totalorder %s17, 0
    %p128 = por %p126, %p127
    %s129 = ssub.s32 %s18, %s30
    %s130 = ssub.s32 %s19, %s26
    %s131 = sor.u32 %s129, %s130
    %p132 = scmp.eq.s32.totalorder %s131, 0
    %s134 = sadd.s32 %s133, 1
    %s135 = scalar_select %p132, %s133, %s134
    %p138 = pneg %p132
    %p139 = scmp.eq.s32.totalorder %s11, 1
    %p140 = por %p138, %p139
    %p141 = scmp.ne.s32.totalorder %s133, %s136
    %p142 = scmp.eq.s32.totalorder %s11, 0
    %p143 = por %p141, %p142
    %p144 = scmp.ne.s32.totalorder %s133, %s136
    %p145 = scmp.eq.s32.totalorder %s16, 1
    %p146 = por %p144, %p145
    %p147 = scmp.ne.s32.totalorder %s136, %s137
    %p148 = scmp.eq.s32.totalorder %s16, 0
    %p149 = por %p147, %p148
    %p150 = scmp.ne.s32.totalorder %s136, %s137
    %p151 = scmp.eq.s32.totalorder %s17, 1
    %p152 = por %p150, %p151
    %p154 = scmp.ne.s32.totalorder %s137, %s153
    %p155 = scmp.eq.s32.totalorder %s17, 0
    %p156 = por %p154, %p155
    %p157 = scmp.le.s32.totalorder 1, %s11
    %p158 = scmp.lt.s32.totalorder %s11, 3
    %p159 = pnand %p157, %p158
    %p160 = pneg %p159
    // Predicated region
    $region9: #{lfsfb_forward.2} parent=5 // pred_check
      _
    $region10: #{lfsfb_forward.2} parent=5 // pred_check_branch
      %162 = sbr.rel (%p159) target = $region12
    $region11: #{lfsfb_forward.2} parent=5 // pred_region
      %s163 = ssub.s32 %s11, 1
      // Predicated region
      $region13: #{lfsfb_forward.2} parent=11 // pred_check
        %p164 = pneg %p44
      $region14: #{lfsfb_forward.2} parent=11 // pred_check_branch
        %166 = sbr.rel (%p164) target = $region16
      $region15: #{lfsfb_forward.2} parent=11 // pred_region
        _
      $region16: #{lfsfb_forward.2} parent=11 // pred_fallthru
        _
      // Predicated region
      $region17: #{lfsfb_forward.2} parent=11 // pred_check
        %p167 = pneg %p65
      $region18: #{lfsfb_forward.2} parent=11 // pred_check_branch
        %169 = sbr.rel (%p167) target = $region20
      $region19: #{lfsfb_forward.2} parent=11 // pred_region
        _
      $region20: #{lfsfb_forward.2} parent=11 // pred_fallthru
        _
    $region12: #{lfsfb_forward.2} parent=5 // pred_fallthru
      _
    %p170 = scmp.lt.s32.totalorder %s11, 2
    // Predicated region
    $region21: #{lfsfb_forward.2} parent=5 // pred_check
      %p171 = pneg %p170
    $region22: #{lfsfb_forward.2} parent=5 // pred_check_branch
      %173 = sbr.rel (%p171) target = $region24
    $region23: #{lfsfb_forward.2} parent=5 // pred_region
      // Predicated region
      $region25: #{lfsfb_forward.2} parent=23 // pred_check
        %p174 = pneg %p87
      $region26: #{lfsfb_forward.2} parent=23 // pred_check_branch
        %176 = sbr.rel (%p174) target = $region28
      $region27: #{lfsfb_forward.2} parent=23 // pred_region
        %s177 = smul.u32 2, %s19
        %p178 = scmp.lt.s32.totalorder %s18, 1
        %s179 = scalar_select %p178, %s18, 1
        %p180 = scmp.lt.s32.totalorder %s177, 1
        %s181 = scalar_select %p180, %s177, 1
        %s182 = smul.addr %s179, 4
        %s183 = sadd.s32 %s181, %s182
        %s184 = smul.addr %s183, 4
        %s185 = scalar_lea.vmem %s2, %s184
        %s186 = smul.u32 2, %s19
      $region28: #{lfsfb_forward.2} parent=23 // pred_fallthru
        _
      // Predicated region
      $region29: #{lfsfb_forward.2} parent=23 // pred_check
        %p187 = pneg %p115
      $region30: #{lfsfb_forward.2} parent=23 // pred_check_branch
        %189 = sbr.rel (%p187) target = $region32
      $region31: #{lfsfb_forward.2} parent=23 // pred_region
        %s190 = smul.u32 2, %s19
        %p191 = scmp.lt.s32.totalorder %s18, 1
        %s192 = scalar_select %p191, %s18, 1
        %p193 = scmp.lt.s32.totalorder %s190, 1
        %s194 = scalar_select %p193, %s190, 1
        %s195 = smul.addr %s192, 4
        %s196 = sadd.s32 %s194, %s195
        %s197 = smul.addr %s196, 4
        %s198 = scalar_lea.vmem %s3, %s197
        %s199 = smul.u32 2, %s19
      $region32: #{lfsfb_forward.2} parent=23 // pred_fallthru
        _
    $region24: #{lfsfb_forward.2} parent=5 // pred_fallthru
      _
    %p200 = scmp.le.s32.totalorder 1, %s11
    %p201 = scmp.lt.s32.totalorder %s11, 3
    %p202 = pnand %p200, %p201
    %p203 = pneg %p202
    // Predicated region
    $region33: #{lfsfb_forward.2} parent=5 // pred_check
      _
    $region34: #{lfsfb_forward.2} parent=5 // pred_check_branch
      %205 = sbr.rel (%p202) target = $region36
    $region35: #{lfsfb_forward.2} parent=5 // pred_region
      %s206 = ssub.s32 %s11, 1
      %p207 = pneg %p44
      %p208 = pneg %p41
      %p209 = pneg %p65
      %p210 = pneg %p62
      %s211 = smul.u32 2, %s21
      %p212 = scmp.lt.s32.totalorder %s20, 1
      %s213 = scalar_select %p212, %s20, 1
      %p214 = scmp.lt.s32.totalorder %s211, 1
      %s215 = scalar_select %p214, %s211, 1
      %s216 = smul.addr %s213, 4
      %s217 = sadd.s32 %s215, %s216
      %s218 = smul.addr %s217, 4
      %s219 = scalar_lea.vmem %s2, %s218
      %p220 = pneg %p93
      %p221 = pneg %p90
      %s222 = smul.u32 2, %s21
      %p223 = scmp.lt.s32.totalorder %s20, 1
      %s224 = scalar_select %p223, %s20, 1
      %p225 = scmp.lt.s32.totalorder %s222, 1
      %s226 = scalar_select %p225, %s222, 1
      %s227 = smul.addr %s224, 4
      %s228 = sadd.s32 %s226, %s227
      %s229 = smul.addr %s228, 4
      %s230 = scalar_lea.vmem %s3, %s229
      %p231 = pneg %p121
      %p232 = pneg %p118
      %p233 = pneg %p149
      %p234 = pneg %p146
      %s235 = smul.u32 2, %s21
      %p236 = scmp.lt.s32.totalorder %s20, 1
      %s237 = scalar_select %p236, %s20, 1
      %p238 = scmp.lt.s32.totalorder %s235, 1
      %s239 = scalar_select %p238, %s235, 1
      %s240 = smul.addr %s237, 4
      %s241 = sadd.s32 %s239, %s240
      %s242 = smul.addr %s241, 4
      %s243 = scalar_lea.vmem %s4, %s242
      %s244 = smul.u32 2, %s21
      %p245 = scmp.lt.s32.totalorder %s20, 1
      %s246 = scalar_select %p245, %s20, 1
      %p247 = scmp.lt.s32.totalorder %s244, 1
      %s248 = scalar_select %p247, %s244, 1
      %s249 = smul.addr %s246, 4
      %s250 = sadd.s32 %s248, %s249
      %s251 = smul.addr %s250, 4
      %s252 = scalar_lea.vmem %s2, %s251
      %s253 = smul.u32 2, %s21
      %s254 = smul.u32 2, %s21
      %p255 = scmp.lt.s32.totalorder %s20, 1
      %s256 = scalar_select %p255, %s20, 1
      %p257 = scmp.lt.s32.totalorder %s254, 1
      %s258 = scalar_select %p257, %s254, 1
      %s259 = smul.addr %s256, 4
      %s260 = sadd.s32 %s258, %s259
      %s261 = smul.addr %s260, 4
      %s262 = scalar_lea.vmem %s3, %s261
      %s263 = smul.u32 2, %s21
      %s264 = smul.u32 2, %s21
      %p265 = scmp.lt.s32.totalorder %s20, 1
      %s266 = scalar_select %p265, %s20, 1
      %p267 = scmp.lt.s32.totalorder %s264, 1
      %s268 = scalar_select %p267, %s264, 1
      %s269 = smul.addr %s266, 4
      %s270 = sadd.s32 %s268, %s269
      %s271 = smul.addr %s270, 4
      %s272 = scalar_lea.vmem %s4, %s271
      %s273 = smul.u32 2, %s21
      %s275 = sld [smem:[#allocation2]]
      %v276 = vld [vmem:[%s1] sm:$0xf]
      %v277 = vld [vmem:[%s1 + $0x4] sm:$0xf]
      %v278 = vld [vmem:[%s252] sm:$0xff]
      %v279 = vld [vmem:[%s252 + $0x8] sm:$0xff]
      %v282 = vunpack.c.l.b16 %v276
      %v283 = vunpack.c.l.b16 %v277
      %v284 = vpack.c.b16 %v283, %v282
      %v287 = vunpack.c.l.b16 %v278
      %v288 = vunpack.c.h.b16 %v278
      %v289 = vunpack.c.l.b16 %v279
      %v290 = vunpack.c.h.b16 %v279
      %v291 = vpack.c.b16 %v289, %v287
      %v292 = vpack.c.b16 %v290, %v288
      %vm295 = vcmask 130048
      %v297 = vsel %vm295, %v284, 0
      %299 = vmatpush.bf16.msra.mxu0 0
      %300 = vmatpush.bf16.msra.mxu0 0
      %301 = vmatpush.bf16.msra.mxu0 0
      %302 = vmatpush.bf16.msra.mxu0 0
      %303 = vmatpush.bf16.msra.mxu0 0
      %304 = vmatpush.bf16.msra.mxu0 0
      %305 = vmatpush.bf16.msra.mxu0 0
      %306 = vmatpush.bf16.msra.mxu0 %v291
      %307 = vmatmul.bf16.gmra.mxu0 %v297
      %v308 = vpop.f32.mrf.mxu0
      %v309 = vadd.f32 0.0, %v308
      %v310 = vpop.f32.mrf.mxu0
      %v311 = vadd.f32 0.0, %v310
      %312 = vdwg.mxu0
      %313 = vmatpush.bf16.msra.mxu0 0
      %314 = vmatpush.bf16.msra.mxu0 0
      %315 = vmatpush.bf16.msra.mxu0 0
      %316 = vmatpush.bf16.msra.mxu0 0
      %317 = vmatpush.bf16.msra.mxu0 0
      %318 = vmatpush.bf16.msra.mxu0 0
      %319 = vmatpush.bf16.msra.mxu0 0
      %320 = vmatpush.bf16.msra.mxu0 %v292
      %321 = vmatmul.bf16.gmra.mxu0 %v297
      %v322 = vpop.f32.mrf.mxu0
      %v323 = vadd.f32 0.0, %v322
      %v324 = vpop.f32.mrf.mxu0
      %v325 = vadd.f32 0.0, %v324
      %326 = vdwg.mxu0
      %vm327 = vcmp.ge.f32.partialorder %v309, 0.0
      %vm328 = vcmp.ge.f32.partialorder %v323, 0.0
      %vm329 = vcmp.ge.f32.partialorder %v311, 0.0
      %vm330 = vcmp.ge.f32.partialorder %v325, 0.0
      %v331 = vstv %s275
      %v332 = vmul.f32 %v331, %v309
      %v333 = vmul.f32 %v331, %v323
      %v334 = vmul.f32 %v331, %v311
      %v335 = vmul.f32 %v331, %v325
      %v336 = vsel %vm327, %v309, %v332
      %v337 = vsel %vm328, %v323, %v333
      %v338 = vsel %vm329, %v311, %v334
      %v339 = vsel %vm330, %v325, %v335
      %v340 = vld [vmem:[%s262] sm:$0xff]
      %v341 = vld [vmem:[%s262 + $0x8] sm:$0xff]
      %v342 = vunpack.c.l.bf16 %v340
      %v343 = vunpack.c.h.bf16 %v340
      %v344 = vunpack.c.l.bf16 %v341
      %v345 = vunpack.c.h.bf16 %v341
      %v346 = vadd.f32 %v336, %v342
      %v347 = vadd.f32 %v337, %v343
      %v348 = vadd.f32 %v338, %v344
      %v349 = vadd.f32 %v339, %v345
      %v350 = vpack.c.bf16 %v347, %v346
      %v351 = vpack.c.bf16 %v349, %v348
      %352 = vst [vmem:[%s272] sm:$0xff] %v350
      %353 = vst [vmem:[%s272 + $0x8] sm:$0xff] %v351
      %s354 = smul.u32 2, %s21
      %p355 = scmp.lt.s32.totalorder %s20, 1
      %s356 = scalar_select %p355, %s20, 1
      %p357 = scmp.lt.s32.totalorder %s354, 1
      %s358 = scalar_select %p357, %s354, 1
      %s359 = smul.addr %s356, 4
      %s360 = sadd.s32 %s358, %s359
      %s361 = smul.addr %s360, 4
      %s362 = scalar_lea.vmem %s4, %s361
      // Predicated region
      $region37: #{lfsfb_forward.2} parent=35 // pred_check
        %p363 = pneg %p146
      $region38: #{lfsfb_forward.2} parent=35 // pred_check_branch
        %365 = sbr.rel (%p363) target = $region40
      $region39: #{lfsfb_forward.2} parent=35 // pred_region
        %s366 = smul.u32 2, %s21
      $region40: #{lfsfb_forward.2} parent=35 // pred_fallthru
        _
    $region36: #{lfsfb_forward.2} parent=5 // pred_fallthru
      _
    %p367 = scmp.le.s32.totalorder 2, %s11
    // Predicated region
    $region41: #{lfsfb_forward.2} parent=5 // pred_check
      %p368 = pneg %p367
    $region42: #{lfsfb_forward.2} parent=5 // pred_check_branch
      %370 = sbr.rel (%p368) target = $region44
    $region43: #{lfsfb_forward.2} parent=5 // pred_region
      %s371 = ssub.s32 %s11, 2
      // Predicated region
      $region45: #{lfsfb_forward.2} parent=43 // pred_check
        %p372 = pneg %p152
      $region46: #{lfsfb_forward.2} parent=43 // pred_check_branch
        %374 = sbr.rel (%p372) target = $region48
      $region47: #{lfsfb_forward.2} parent=43 // pred_region
        %s375 = smul.u32 2, %s23
        %p376 = scmp.lt.s32.totalorder %s22, 1
        %s377 = scalar_select %p376, %s22, 1
        %p378 = scmp.lt.s32.totalorder %s375, 1
        %s379 = scalar_select %p378, %s375, 1
        %s380 = smul.addr %s377, 4
        %s381 = sadd.s32 %s379, %s380
        %s382 = smul.addr %s381, 4
        %s383 = scalar_lea.vmem %s4, %s382
      $region48: #{lfsfb_forward.2} parent=43 // pred_fallthru
        _
    $region44: #{lfsfb_forward.2} parent=5 // pred_fallthru
      _
  $region6: #{lfsfb_forward.2} parent=0 // loop_footer
    %s15 = sadd.s32 1, %s11
  $region7: #{lfsfb_forward.2} parent=0 // loop_footer_branch
    %10 = sbr.rel target = $region3
  $region8: #{lfsfb_forward.2} parent=0 // loop_exit
    _

// kernel: lfsfb_forward.3
$region0: #{lfsfb_forward.3}
  #allocation0 [shape = 'u32[]', space=smem, size = 0x4, offset = 0x4, fixed_abs, tag = 'smem constant byte address 0x4 - core index']
  #allocation1 [shape = 'u32[72,128]{1,0:T(1,128)}', space=vmem, size = 0x9000, scoped, tag = 'internal scratch']
  #allocation2 [shape = 'f32[1]{0:T(128)S(6)}', space=smem, size = 0x200, scoped, tag = 'scoped memory for lfsfb_forward.3']
  %s0 = inlined_call_operand.<no memory space> [shape: f32[1], index: 0, kind: input, shape index: {}]
  %s1 = inlined_call_operand.vmem [shape: bf16[64,64], index: 1, kind: input, shape index: {}]
  %s2 = inlined_call_operand.vmem [shape: bf16[2,64,256], index: 2, kind: input, shape index: {}]
  %s3 = inlined_call_operand.vmem [shape: f32[2,64,256], index: 3, kind: output, shape index: {}]
  %s4 = sld [smem:[#allocation0]]
  $region45: #{lfsfb_forward.3} parent=0
    _
  %s6 = ssub.s32 1, %s4
  %s7 = scalar_select 0, %s6, %s4
  %8 = sst [smem:[#allocation2]] %s0
  loop: start=0, step=1, limit=4
  $region2: #{lfsfb_forward.3} parent=0 // loop_pre_header
    _
  $region3: #{lfsfb_forward.3} parent=0 // loop_header
    %s10 = sphi 0, %s14
    %p11 = scmp.ge.s32.totalorder %s10, 4
    %s17 = sphi 0, %s29
    %s18 = sphi 0, %s25
    %s19 = sphi 0, %s17
    %s20 = sphi 0, %s18
    %s21 = sphi 0, %s19
    %s22 = sphi 0, %s20
    %s30 = sphi 0, %s30
    %s32 = sphi 0, %s30
    %s33 = sphi 0, %s32
    %s47 = sphi 0, %s33
    %s51 = sphi 0, %s51
    %s53 = sphi 0, %s51
    %s54 = sphi 0, %s53
    %s68 = sphi 0, %s54
    %s76 = sphi 0, %s78
    %s79 = sphi 0, %s76
    %s80 = sphi 0, %s79
    %s96 = sphi 0, %s80
    %s104 = sphi 0, %s106
    %s107 = sphi 0, %s104
    %s108 = sphi 0, %s107
    %s124 = sphi 0, %s108
  $region4: #{lfsfb_forward.3} parent=0 // loop_header_branch
    %13 = sbr.rel (%p11) target = $region8
  $region5: #{lfsfb_forward.3} parent=0 // loop_body
    %s15 = ssub.s32 %s10, 1
    %s16 = ssub.s32 %s10, 2
    %s23 = sadd.s32 1, %s18
    %p24 = scmp.ge.s32.totalorder %s23, 1
    %s25 = scalar_select %p24, 0, %s23
    %s26 = sadd.s32 1, %s17
    %s27 = scalar_select %p24, %s26, %s17
    %p28 = scmp.ge.s32.totalorder %s27, 2
    %s29 = scalar_select %p28, 0, %s27
    %s31 = sadd.s32 %s30, 1
    %p34 = scmp.eq.s32.totalorder %s10, 1
    %p35 = scmp.ne.s32.totalorder %s30, %s32
    %p36 = scmp.eq.s32.totalorder %s10, 0
    %p37 = por %p35, %p36
    %p38 = scmp.ne.s32.totalorder %s30, %s32
    %p39 = scmp.eq.s32.totalorder %s15, 1
    %p40 = por %p38, %p39
    %p41 = scmp.ne.s32.totalorder %s32, %s33
    %p42 = scmp.eq.s32.totalorder %s15, 0
    %p43 = por %p41, %p42
    %p44 = scmp.ne.s32.totalorder %s32, %s33
    %p45 = scmp.eq.s32.totalorder %s16, 1
    %p46 = por %p44, %p45
    %p48 = scmp.ne.s32.totalorder %s33, %s47
    %p49 = scmp.eq.s32.totalorder %s16, 0
    %p50 = por %p48, %p49
    %s52 = sadd.s32 %s51, 1
    %p55 = scmp.eq.s32.totalorder %s10, 1
    %p56 = scmp.ne.s32.totalorder %s51, %s53
    %p57 = scmp.eq.s32.totalorder %s10, 0
    %p58 = por %p56, %p57
    %p59 = scmp.ne.s32.totalorder %s51, %s53
    %p60 = scmp.eq.s32.totalorder %s15, 1
    %p61 = por %p59, %p60
    %p62 = scmp.ne.s32.totalorder %s53, %s54
    %p63 = scmp.eq.s32.totalorder %s15, 0
    %p64 = por %p62, %p63
    %p65 = scmp.ne.s32.totalorder %s53, %s54
    %p66 = scmp.eq.s32.totalorder %s16, 1
    %p67 = por %p65, %p66
    %p69 = scmp.ne.s32.totalorder %s54, %s68
    %p70 = scmp.eq.s32.totalorder %s16, 0
    %p71 = por %p69, %p70
    %s72 = ssub.s32 %s17, %s29
    %s73 = ssub.s32 %s18, %s25
    %s74 = sor.u32 %s72, %s73
    %p75 = scmp.eq.s32.totalorder %s74, 0
    %s77 = sadd.s32 %s76, 1
    %s78 = scalar_select %p75, %s76, %s77
    %p81 = pneg %p75
    %p82 = scmp.eq.s32.totalorder %s10, 1
    %p83 = por %p81, %p82
    %p84 = scmp.ne.s32.totalorder %s76, %s79
    %p85 = scmp.eq.s32.totalorder %s10, 0
    %p86 = por %p84, %p85
    %p87 = scmp.ne.s32.totalorder %s76, %s79
    %p88 = scmp.eq.s32.totalorder %s15, 1
    %p89 = por %p87, %p88
    %p90 = scmp.ne.s32.totalorder %s79, %s80
    %p91 = scmp.eq.s32.totalorder %s15, 0
    %p92 = por %p90, %p91
    %p93 = scmp.ne.s32.totalorder %s79, %s80
    %p94 = scmp.eq.s32.totalorder %s16, 1
    %p95 = por %p93, %p94
    %p97 = scmp.ne.s32.totalorder %s80, %s96
    %p98 = scmp.eq.s32.totalorder %s16, 0
    %p99 = por %p97, %p98
    %s100 = ssub.s32 %s17, %s29
    %s101 = ssub.s32 %s18, %s25
    %s102 = sor.u32 %s100, %s101
    %p103 = scmp.eq.s32.totalorder %s102, 0
    %s105 = sadd.s32 %s104, 1
    %s106 = scalar_select %p103, %s104, %s105
    %p109 = pneg %p103
    %p110 = scmp.eq.s32.totalorder %s10, 1
    %p111 = por %p109, %p110
    %p112 = scmp.ne.s32.totalorder %s104, %s107
    %p113 = scmp.eq.s32.totalorder %s10, 0
    %p114 = por %p112, %p113
    %p115 = scmp.ne.s32.totalorder %s104, %s107
    %p116 = scmp.eq.s32.totalorder %s15, 1
    %p117 = por %p115, %p116
    %p118 = scmp.ne.s32.totalorder %s107, %s108
    %p119 = scmp.eq.s32.totalorder %s15, 0
    %p120 = por %p118, %p119
    %p121 = scmp.ne.s32.totalorder %s107, %s108
    %p122 = scmp.eq.s32.totalorder %s16, 1
    %p123 = por %p121, %p122
    %p125 = scmp.ne.s32.totalorder %s108, %s124
    %p126 = scmp.eq.s32.totalorder %s16, 0
    %p127 = por %p125, %p126
    %p128 = scmp.le.s32.totalorder 1, %s10
    %p129 = scmp.lt.s32.totalorder %s10, 3
    %p130 = pnand %p128, %p129
    %p131 = pneg %p130
    // Predicated region
    $region9: #{lfsfb_forward.3} parent=5 // pred_check
      _
    $region10: #{lfsfb_forward.3} parent=5 // pred_check_branch
      %133 = sbr.rel (%p130) target = $region12
    $region11: #{lfsfb_forward.3} parent=5 // pred_region
      %s134 = ssub.s32 %s10, 1
      // Predicated region
      $region13: #{lfsfb_forward.3} parent=11 // pred_check
        %p135 = pneg %p43
      $region14: #{lfsfb_forward.3} parent=11 // pred_check_branch
        %137 = sbr.rel (%p135) target = $region16
      $region15: #{lfsfb_forward.3} parent=11 // pred_region
        _
      $region16: #{lfsfb_forward.3} parent=11 // pred_fallthru
        _
      // Predicated region
      $region17: #{lfsfb_forward.3} parent=11 // pred_check
        %p138 = pneg %p64
      $region18: #{lfsfb_forward.3} parent=11 // pred_check_branch
        %140 = sbr.rel (%p138) target = $region20
      $region19: #{lfsfb_forward.3} parent=11 // pred_region
        _
      $region20: #{lfsfb_forward.3} parent=11 // pred_fallthru
        _
    $region12: #{lfsfb_forward.3} parent=5 // pred_fallthru
      _
    %p141 = scmp.lt.s32.totalorder %s10, 2
    // Predicated region
    $region21: #{lfsfb_forward.3} parent=5 // pred_check
      %p142 = pneg %p141
    $region22: #{lfsfb_forward.3} parent=5 // pred_check_branch
      %144 = sbr.rel (%p142) target = $region24
    $region23: #{lfsfb_forward.3} parent=5 // pred_region
      // Predicated region
      $region25: #{lfsfb_forward.3} parent=23 // pred_check
        %p145 = pneg %p86
      $region26: #{lfsfb_forward.3} parent=23 // pred_check_branch
        %147 = sbr.rel (%p145) target = $region28
      $region27: #{lfsfb_forward.3} parent=23 // pred_region
        %s148 = smul.u32 2, %s18
        %p149 = scmp.lt.s32.totalorder %s17, 1
        %s150 = scalar_select %p149, %s17, 1
        %p151 = scmp.lt.s32.totalorder %s148, 1
        %s152 = scalar_select %p151, %s148, 1
        %s153 = smul.addr %s150, 16
        %s154 = sadd.s32 %s152, %s153
        %s155 = smul.addr %s154, 4
        %s156 = scalar_lea.vmem %s2, %s155
        %s157 = smul.u32 2, %s18
      $region28: #{lfsfb_forward.3} parent=23 // pred_fallthru
        _
    $region24: #{lfsfb_forward.3} parent=5 // pred_fallthru
      _
    %p158 = scmp.le.s32.totalorder 1, %s10
    %p159 = scmp.lt.s32.totalorder %s10, 3
    %p160 = pnand %p158, %p159
    %p161 = pneg %p160
    // Predicated region
    $region29: #{lfsfb_forward.3} parent=5 // pred_check
      _
    $region30: #{lfsfb_forward.3} parent=5 // pred_check_branch
      %163 = sbr.rel (%p160) target = $region32
    $region31: #{lfsfb_forward.3} parent=5 // pred_region
      %s164 = ssub.s32 %s10, 1
      %p165 = pneg %p43
      %p166 = pneg %p40
      %p167 = pneg %p64
      %p168 = pneg %p61
      %s169 = smul.u32 2, %s20
      %p170 = scmp.lt.s32.totalorder %s19, 1
      %s171 = scalar_select %p170, %s19, 1
      %p172 = scmp.lt.s32.totalorder %s169, 1
      %s173 = scalar_select %p172, %s169, 1
      %s174 = smul.addr %s171, 16
      %s175 = sadd.s32 %s173, %s174
      %s176 = smul.addr %s175, 4
      %s177 = scalar_lea.vmem %s2, %s176
      %p178 = pneg %p92
      %p179 = pneg %p89
      %p180 = pneg %p120
      %p181 = pneg %p117
      %s182 = smul.u32 2, %s20
      %p183 = scmp.lt.s32.totalorder %s19, 1
      %s184 = scalar_select %p183, %s19, 1
      %p185 = scmp.lt.s32.totalorder %s182, 1
      %s186 = scalar_select %p185, %s182, 1
      %s187 = smul.addr %s184, 16
      %s188 = sadd.s32 %s186, %s187
      %s189 = smul.addr %s188, 8
      %s190 = scalar_lea.vmem %s3, %s189
      %s191 = smul.u32 2, %s20
      %p192 = scmp.lt.s32.totalorder %s19, 1
      %s193 = scalar_select %p192, %s19, 1
      %p194 = scmp.lt.s32.totalorder %s191, 1
      %s195 = scalar_select %p194, %s191, 1
      %s196 = smul.addr %s193, 16
      %s197 = sadd.s32 %s195, %s196
      %s198 = smul.addr %s197, 4
      %s199 = scalar_lea.vmem %s2, %s198
      %s200 = smul.u32 2, %s20
      %s201 = smul.u32 2, %s20
      %p202 = scmp.lt.s32.totalorder %s19, 1
      %s203 = scalar_select %p202, %s19, 1
      %p204 = scmp.lt.s32.totalorder %s201, 1
      %s205 = scalar_select %p204, %s201, 1
      %s206 = smul.addr %s203, 16
      %s207 = sadd.s32 %s205, %s206
      %s208 = smul.addr %s207, 8
      %s209 = scalar_lea.vmem %s3, %s208
      %s210 = smul.u32 2, %s20
      %s212 = sld [smem:[#allocation2]]
      %v213 = vld [vmem:[%s1] sm:$0xf]
      %v214 = vld [vmem:[%s1 + $0x4] sm:$0xf]
      %v215 = vld [vmem:[%s1 + $0x8] sm:$0xf]
      %v216 = vld [vmem:[%s1 + $0xc] sm:$0xf]
      %v217 = vld [vmem:[%s1 + $0x10] sm:$0xf]
      %v218 = vld [vmem:[%s1 + $0x14] sm:$0xf]
      %v219 = vld [vmem:[%s1 + $0x18] sm:$0xf]
      %v220 = vld [vmem:[%s1 + $0x1c] sm:$0xf]
      %v221 = vld [vmem:[%s199] sm:$0xff]
      %v222 = vld [vmem:[%s199 + $0x8] sm:$0xff]
      %v223 = vld [vmem:[%s199 + $0x10] sm:$0xff]
      %v224 = vld [vmem:[%s199 + $0x18] sm:$0xff]
      %v225 = vld [vmem:[%s199 + $0x20] sm:$0xff]
      %v226 = vld [vmem:[%s199 + $0x28] sm:$0xff]
      %v227 = vld [vmem:[%s199 + $0x30] sm:$0xff]
      %v228 = vld [vmem:[%s199 + $0x38] sm:$0xff]
      %v237 = vunpack.c.l.b16 %v213
      %v238 = vunpack.c.l.b16 %v214
      %v239 = vunpack.c.l.b16 %v215
      %v240 = vunpack.c.l.b16 %v216
      %v241 = vunpack.c.l.b16 %v217
      %v242 = vunpack.c.l.b16 %v218
      %v243 = vunpack.c.l.b16 %v219
      %v244 = vunpack.c.l.b16 %v220
      %v245 = vpack.c.b16 %v238, %v237
      %v246 = vpack.c.b16 %v240, %v239
      %v247 = vpack.c.b16 %v242, %v241
      %v248 = vpack.c.b16 %v244, %v243
      %v257 = vunpack.c.l.b16 %v221
      %v258 = vunpack.c.h.b16 %v221
      %v259 = vunpack.c.l.b16 %v222
      %v260 = vunpack.c.h.b16 %v222
      %v261 = vunpack.c.l.b16 %v223
      %v262 = vunpack.c.h.b16 %v223
      %v263 = vunpack.c.l.b16 %v224
      %v264 = vunpack.c.h.b16 %v224
      %v265 = vunpack.c.l.b16 %v225
      %v266 = vunpack.c.h.b16 %v225
      %v267 = vunpack.c.l.b16 %v226
      %v268 = vunpack.c.h.b16 %v226
      %v269 = vunpack.c.l.b16 %v227
      %v270 = vunpack.c.h.b16 %v227
      %v271 = vunpack.c.l.b16 %v228
      %v272 = vunpack.c.h.b16 %v228
      %v273 = vpack.c.b16 %v259, %v257
      %v274 = vpack.c.b16 %v260, %v258
      %v275 = vpack.c.b16 %v263, %v261
      %v276 = vpack.c.b16 %v264, %v262
      %v277 = vpack.c.b16 %v267, %v265
      %v278 = vpack.c.b16 %v268, %v266
      %v279 = vpack.c.b16 %v271, %v269
      %v280 = vpack.c.b16 %v272, %v270
      %vm289 = vcmask 523264
      %v291 = vsel %vm289, %v245, 0
      %v294 = vsel %vm289, %v246, 0
      %v297 = vsel %vm289, %v247, 0
      %v300 = vsel %vm289, %v248, 0
      %302 = vmatpush.bf16.msra.mxu0 0
      %303 = vmatpush.bf16.msra.mxu0 0
      %304 = vmatpush.bf16.msra.mxu0 0
      %305 = vmatpush.bf16.msra.mxu0 0
      %306 = vmatpush.bf16.msra.mxu0 %v279
      %307 = vmatpush.bf16.msra.mxu0 %v277
      %308 = vmatpush.bf16.msra.mxu0 %v275
      %309 = vmatpush.bf16.msra.mxu0 %v273
      %310 = vmatmul.bf16.gmra.mxu0 %v291
      %v311 = vpop.f32.mrf.mxu0
      %v312 = vadd.f32 0.0, %v311
      %v313 = vpop.f32.mrf.mxu0
      %v314 = vadd.f32 0.0, %v313
      %315 = vmatmul.bf16.gmra.mxu0 %v294
      %v316 = vpop.f32.mrf.mxu0
      %v317 = vadd.f32 0.0, %v316
      %v318 = vpop.f32.mrf.mxu0
      %v319 = vadd.f32 0.0, %v318
      %320 = vmatmul.bf16.gmra.mxu0 %v297
      %v321 = vpop.f32.mrf.mxu0
      %v322 = vadd.f32 0.0, %v321
      %v323 = vpop.f32.mrf.mxu0
      %v324 = vadd.f32 0.0, %v323
      %325 = vmatmul.bf16.gmra.mxu0 %v300
      %v326 = vpop.f32.mrf.mxu0
      %v327 = vadd.f32 0.0, %v326
      %v328 = vpop.f32.mrf.mxu0
      %v329 = vadd.f32 0.0, %v328
      %330 = vdwg.mxu0
      %331 = vmatpush.bf16.msra.mxu0 0
      %332 = vmatpush.bf16.msra.mxu0 0
      %333 = vmatpush.bf16.msra.mxu0 0
      %334 = vmatpush.bf16.msra.mxu0 0
      %335 = vmatpush.bf16.msra.mxu0 %v280
      %336 = vmatpush.bf16.msra.mxu0 %v278
      %337 = vmatpush.bf16.msra.mxu0 %v276
      %338 = vmatpush.bf16.msra.mxu0 %v274
      %339 = vmatmul.bf16.gmra.mxu0 %v291
      %v340 = vpop.f32.mrf.mxu0
      %v341 = vadd.f32 0.0, %v340
      %v342 = vpop.f32.mrf.mxu0
      %v343 = vadd.f32 0.0, %v342
      %344 = vmatmul.bf16.gmra.mxu0 %v294
      %v345 = vpop.f32.mrf.mxu0
      %v346 = vadd.f32 0.0, %v345
      %v347 = vpop.f32.mrf.mxu0
      %v348 = vadd.f32 0.0, %v347
      %349 = vmatmul.bf16.gmra.mxu0 %v297
      %v350 = vpop.f32.mrf.mxu0
      %v351 = vadd.f32 0.0, %v350
      %v352 = vpop.f32.mrf.mxu0
      %v353 = vadd.f32 0.0, %v352
      %354 = vmatmul.bf16.gmra.mxu0 %v300
      %v355 = vpop.f32.mrf.mxu0
      %v356 = vadd.f32 0.0, %v355
      %v357 = vpop.f32.mrf.mxu0
      %v358 = vadd.f32 0.0, %v357
      %359 = vdwg.mxu0
      %vm360 = vcmp.ge.f32.partialorder %v312, 0.0
      %vm361 = vcmp.ge.f32.partialorder %v341, 0.0
      %vm362 = vcmp.ge.f32.partialorder %v314, 0.0
      %vm363 = vcmp.ge.f32.partialorder %v343, 0.0
      %vm364 = vcmp.ge.f32.partialorder %v317, 0.0
      %vm365 = vcmp.ge.f32.partialorder %v346, 0.0
      %vm366 = vcmp.ge.f32.partialorder %v319, 0.0
      %vm367 = vcmp.ge.f32.partialorder %v348, 0.0
      %vm368 = vcmp.ge.f32.partialorder %v322, 0.0
      %vm369 = vcmp.ge.f32.partialorder %v351, 0.0
      %vm370 = vcmp.ge.f32.partialorder %v324, 0.0
      %vm371 = vcmp.ge.f32.partialorder %v353, 0.0
      %vm372 = vcmp.ge.f32.partialorder %v327, 0.0
      %vm373 = vcmp.ge.f32.partialorder %v356, 0.0
      %vm374 = vcmp.ge.f32.partialorder %v329, 0.0
      %vm375 = vcmp.ge.f32.partialorder %v358, 0.0
      %v376 = vstv %s212
      %v377 = vmul.f32 %v376, %v312
      %v378 = vmul.f32 %v376, %v341
      %v379 = vmul.f32 %v376, %v314
      %v380 = vmul.f32 %v376, %v343
      %v381 = vmul.f32 %v376, %v317
      %v382 = vmul.f32 %v376, %v346
      %v383 = vmul.f32 %v376, %v319
      %v384 = vmul.f32 %v376, %v348
      %v385 = vmul.f32 %v376, %v322
      %v386 = vmul.f32 %v376, %v351
      %v387 = vmul.f32 %v376, %v324
      %v388 = vmul.f32 %v376, %v353
      %v389 = vmul.f32 %v376, %v327
      %v390 = vmul.f32 %v376, %v356
      %v391 = vmul.f32 %v376, %v329
      %v392 = vmul.f32 %v376, %v358
      %v393 = vsel %vm360, %v312, %v377
      %v394 = vsel %vm361, %v341, %v378
      %v395 = vsel %vm362, %v314, %v379
      %v396 = vsel %vm363, %v343, %v380
      %v397 = vsel %vm364, %v317, %v381
      %v398 = vsel %vm365, %v346, %v382
      %v399 = vsel %vm366, %v319, %v383
      %v400 = vsel %vm367, %v348, %v384
      %v401 = vsel %vm368, %v322, %v385
      %v402 = vsel %vm369, %v351, %v386
      %v403 = vsel %vm370, %v324, %v387
      %v404 = vsel %vm371, %v353, %v388
      %v405 = vsel %vm372, %v327, %v389
      %v406 = vsel %vm373, %v356, %v390
      %v407 = vsel %vm374, %v329, %v391
      %v408 = vsel %vm375, %v358, %v392
      %409 = vst [vmem:[%s209] sm:$0xff] %v393
      %410 = vst [vmem:[%s209 + $0x8] sm:$0xff] %v394
      %411 = vst [vmem:[%s209 + $0x10] sm:$0xff] %v395
      %412 = vst [vmem:[%s209 + $0x18] sm:$0xff] %v396
      %413 = vst [vmem:[%s209 + $0x20] sm:$0xff] %v397
      %414 = vst [vmem:[%s209 + $0x28] sm:$0xff] %v398
      %415 = vst [vmem:[%s209 + $0x30] sm:$0xff] %v399
      %416 = vst [vmem:[%s209 + $0x38] sm:$0xff] %v400
      %417 = vst [vmem:[%s209 + $0x40] sm:$0xff] %v401
      %418 = vst [vmem:[%s209 + $0x48] sm:$0xff] %v402
      %419 = vst [vmem:[%s209 + $0x50] sm:$0xff] %v403
      %420 = vst [vmem:[%s209 + $0x58] sm:$0xff] %v404
      %421 = vst [vmem:[%s209 + $0x60] sm:$0xff] %v405
      %422 = vst [vmem:[%s209 + $0x68] sm:$0xff] %v406
      %423 = vst [vmem:[%s209 + $0x70] sm:$0xff] %v407
      %424 = vst [vmem:[%s209 + $0x78] sm:$0xff] %v408
      %s425 = smul.u32 2, %s20
      %p426 = scmp.lt.s32.totalorder %s19, 1
      %s427 = scalar_select %p426, %s19, 1
      %p428 = scmp.lt.s32.totalorder %s425, 1
      %s429 = scalar_select %p428, %s425, 1
      %s430 = smul.addr %s427, 16
      %s431 = sadd.s32 %s429, %s430
      %s432 = smul.addr %s431, 8
      %s433 = scalar_lea.vmem %s3, %s432
      // Predicated region
      $region33: #{lfsfb_forward.3} parent=31 // pred_check
        %p434 = pneg %p117
      $region34: #{lfsfb_forward.3} parent=31 // pred_check_branch
        %436 = sbr.rel (%p434) target = $region36
      $region35: #{lfsfb_forward.3} parent=31 // pred_region
        %s437 = smul.u32 2, %s20
      $region36: #{lfsfb_forward.3} parent=31 // pred_fallthru
        _
    $region32: #{lfsfb_forward.3} parent=5 // pred_fallthru
      _
    %p438 = scmp.le.s32.totalorder 2, %s10
    // Predicated region
    $region37: #{lfsfb_forward.3} parent=5 // pred_check
      %p439 = pneg %p438
    $region38: #{lfsfb_forward.3} parent=5 // pred_check_branch
      %441 = sbr.rel (%p439) target = $region40
    $region39: #{lfsfb_forward.3} parent=5 // pred_region
      %s442 = ssub.s32 %s10, 2
      // Predicated region
      $region41: #{lfsfb_forward.3} parent=39 // pred_check
        %p443 = pneg %p123
      $region42: #{lfsfb_forward.3} parent=39 // pred_check_branch
        %445 = sbr.rel (%p443) target = $region44
      $region43: #{lfsfb_forward.3} parent=39 // pred_region
        %s446 = smul.u32 2, %s22
        %p447 = scmp.lt.s32.totalorder %s21, 1
        %s448 = scalar_select %p447, %s21, 1
        %p449 = scmp.lt.s32.totalorder %s446, 1
        %s450 = scalar_select %p449, %s446, 1
        %s451 = smul.addr %s448, 16
        %s452 = sadd.s32 %s450, %s451
        %s453 = smul.addr %s452, 8
        %s454 = scalar_lea.vmem %s3, %s453
      $region44: #{lfsfb_forward.3} parent=39 // pred_fallthru
        _
    $region40: #{lfsfb_forward.3} parent=5 // pred_fallthru
      _
  $region6: #{lfsfb_forward.3} parent=0 // loop_footer
    %s14 = sadd.s32 1, %s10
  $region7: #{lfsfb_forward.3} parent=0 // loop_footer_branch
    %9 = sbr.rel target = $region3
  $region8: #{lfsfb_forward.3} parent=0 // loop_exit
    _

</llo_original>
